<compile_context>
chip_gen: v7x
topology: tpu7x:2x2x1
jax: 0.10.0
libtpu: 0.0.40
codegen_flags: <defaults>
</compile_context>

<pallas_src>
import jax
import jax.numpy as jnp
from jax.experimental import pallas as pl
from jax.experimental.pallas import tpu as pltpu


# Below this total size, jnp.concatenate (fusable by XLA, no custom-call
# launch overhead) is strictly faster than launching the Pallas kernel.
_SMALL_BYTES_THRESHOLD = 256 * 1024  # 256 KiB
# Max concurrent DMA chunks per input along the batch axis.
_MAX_DMA_CHUNKS = 4


def _chunk_ranges(n, k):
    """Split range(n) into k static (start, size) chunks (sizes differ by <=1)."""
    base, rem = divmod(n, k)
    ranges, start = [], 0
    for i in range(k):
        size = base + (1 if i < rem else 0)
        ranges.append((start, size))
        start += size
    return ranges


def _make_concat_dma_kernel(num_chunks):
    """Build a kernel copying x -> out[:, :F1] and y -> out[:, F1:] via HBM DMAs.

    x_hbm: (N, F1), y_hbm: (N, F2), o_hbm: (N, F1 + F2); all raw HBM refs
    (memory_space=pl.ANY).  Each input copy is split into `num_chunks`
    concurrent DMAs along N; all are started back-to-back, then waited on.
    """

    def kernel(x_hbm, y_hbm, o_hbm, sem):
        n = x_hbm.shape[0]
        f1 = x_hbm.shape[1]
        f2 = y_hbm.shape[1]

        copies = []
        for i, (s, sz) in enumerate(_chunk_ranges(n, num_chunks)):
            copies.append(
                pltpu.make_async_copy(
                    x_hbm.at[pl.ds(s, sz), :],
                    o_hbm.at[pl.ds(s, sz), pl.ds(0, f1)],
                    sem.at[0, i],
                )
            )
        for i, (s, sz) in enumerate(_chunk_ranges(n, num_chunks)):
            copies.append(
                pltpu.make_async_copy(
                    y_hbm.at[pl.ds(s, sz), :],
                    o_hbm.at[pl.ds(s, sz), pl.ds(f1, f2)],
                    sem.at[1, i],
                )
            )

        # Issue every DMA so they stream concurrently, then wait for all.
        for cp in copies:
            cp.start()
        for cp in copies:
            cp.wait()

    return kernel


def concat_block(x, y, *, force_pallas=False):
    """Equivalent of torch.cat((x, y), dim=1) for NCHW tensors."""
    assert x.shape[0] == y.shape[0], "batch dims must match"
    assert x.shape[2:] == y.shape[2:], "spatial dims must match"
    assert x.dtype == y.dtype, "dtypes must match"
    N, C1, H, W = x.shape
    C2 = y.shape[1]

    total_bytes = (x.size + y.size) * x.dtype.itemsize
    if not force_pallas and total_bytes < _SMALL_BYTES_THRESHOLD:
        # Small tensors: custom-call launch overhead dominates; let XLA handle
        # (and possibly fuse) the concat.
        return jnp.concatenate([x, y], axis=1)

    # Flatten (C, H, W) -> one trailing axis: each DMA becomes a 2-D strided
    # copy with maximal contiguous bursts.  The reshapes are metadata-only for
    # contiguous row-major arrays.
    f1 = C1 * H * W
    f2 = C2 * H * W
    x_flat = x.reshape(N, f1)
    y_flat = y.reshape(N, f2)

    num_chunks = max(1, min(_MAX_DMA_CHUNKS, N))

    out_flat = pl.pallas_call(
        _make_concat_dma_kernel(num_chunks),
        out_shape=jax.ShapeDtypeStruct((N, f1 + f2), x.dtype),
        in_specs=[
            pl.BlockSpec(memory_space=pl.ANY),   # x stays in HBM, no auto-DMA
            pl.BlockSpec(memory_space=pl.ANY),   # y stays in HBM, no auto-DMA
        ],
        out_specs=pl.BlockSpec(memory_space=pl.ANY),  # written via manual DMA
        scratch_shapes=[pltpu.SemaphoreType.DMA((2, num_chunks))],
    )(x_flat, y_flat)

    return out_flat.reshape(N, C1 + C2, H, W)


if __name__ == "__main__":
    key = jax.random.PRNGKey(0)
    kx, ky, kx2, ky2, kx3, ky3 = jax.random.split(key, 6)

    # 1) Small NCHW inputs (batch=2, channels=4+4, 16x16): the wrapper routes
    #    these to jnp.concatenate (fast path), and we also force the Pallas
    #    kernel to verify it on the same shapes.
    x = jax.random.normal(kx, (2, 4, 16, 16), dtype=jnp.float32)
    y = jax.random.normal(ky, (2, 4, 16, 16), dtype=jnp.float32)
    ref = jnp.concatenate([x, y], axis=1)

    out_auto = jax.block_until_ready(concat_block(x, y))
    assert out_auto.shape == (2, 8, 16, 16) and out_auto.dtype == x.dtype
    assert bool(jnp.array_equal(out_auto, ref))

    out_pallas = jax.block_until_ready(concat_block(x, y, force_pallas=True))
    assert out_pallas.shape == (2, 8, 16, 16) and out_pallas.dtype == x.dtype
    assert bool(jnp.array_equal(out_pallas, ref))

    # 2) Unequal / odd channel counts (odd seam in elements is handled by the
    #    DMA engine for 32-bit dtypes).
    x2 = jax.random.normal(kx2, (2, 3, 16, 16), dtype=jnp.float32)
    y2 = jax.random.normal(ky2, (2, 5, 16, 16), dtype=jnp.float32)
    out2 = jax.block_until_ready(concat_block(x2, y2, force_pallas=True))
    ref2 = jnp.concatenate([x2, y2], axis=1)
    assert out2.shape == (2, 8, 16, 16)
    assert bool(jnp.array_equal(out2, ref2))

    # 3) Moderate size that exceeds the small-size threshold: exercises the
    #    automatic Pallas path with chunked (4-way) concurrent DMAs, and a
    #    packed dtype (bf16) with a lane-aligned seam.
    x3 = jax.random.normal(kx3, (4, 32, 32, 32), dtype=jnp.float32)
    y3 = jax.random.normal(ky3, (4, 16, 32, 32), dtype=jnp.float32)
    out3 = jax.block_until_ready(concat_block(x3, y3))
    ref3 = jnp.concatenate([x3, y3], axis=1)
    assert out3.shape == (4, 48, 32, 32)
    assert bool(jnp.array_equal(out3, ref3))

    xb = x.astype(jnp.bfloat16)
    yb = y.astype(jnp.bfloat16)
    outb = jax.block_until_ready(concat_block(xb, yb, force_pallas=True))
    refb = jnp.concatenate([xb, yb], axis=1)
    assert outb.dtype == jnp.bfloat16
    assert bool(jnp.array_equal(outb, refb))

    print("KERNEL_OK")
</pallas_src>

<mosaic_0001>
module attributes {stable_mosaic.version = 11 : i64} {
  func.func @kernel(%arg0: memref<2x1024xf32, #tpu.memory_space<any>>, %arg1: memref<2x1024xf32, #tpu.memory_space<any>>, %arg2: memref<2x2048xf32, #tpu.memory_space<any>>, %arg3: memref<2x2x!tpu.dma_semaphore, #tpu.memory_space<semaphore_mem>>) attributes {dimension_semantics = [], scalar_prefetch = 0 : i64, scratch_operands = 1 : i64, tpu.core_type = #tpu.core_type<tc>} {
    %c0_i32 = arith.constant 0 : i32
    %c0_i32_0 = arith.constant 0 : i32
    %c0_i32_1 = arith.constant 0 : i32
    %c0_i32_2 = arith.constant 0 : i32
    %0 = tpu.memref_slice %arg0[%c0_i32_1, %c0_i32_2] : memref<2x1024xf32, #tpu.memory_space<any>> -> memref<1x1024xf32, #tpu.memory_space<any>>
    %c0_i32_3 = arith.constant 0 : i32
    %c0_i32_4 = arith.constant 0 : i32
    %1 = tpu.memref_slice %arg2[%c0_i32_3, %c0_i32_4] : memref<2x2048xf32, #tpu.memory_space<any>> -> memref<1x1024xf32, #tpu.memory_space<any>>
    %2 = tpu.memref_slice %arg3[%c0_i32, %c0_i32_0] : memref<2x2x!tpu.dma_semaphore, #tpu.memory_space<semaphore_mem>> -> memref<1x1x!tpu.dma_semaphore, #tpu.memory_space<semaphore_mem>>
    %3 = tpu.memref_squeeze %2 : memref<1x1x!tpu.dma_semaphore, #tpu.memory_space<semaphore_mem>> -> memref<!tpu.dma_semaphore, #tpu.memory_space<semaphore_mem>>
    tpu.enqueue_dma source(%0 : memref<1x1024xf32, #tpu.memory_space<any>>) target(%1 : memref<1x1024xf32, #tpu.memory_space<any>>) target_semaphore(%3 : memref<!tpu.dma_semaphore, #tpu.memory_space<semaphore_mem>>)
    %c0_i32_5 = arith.constant 0 : i32
    %c1_i32 = arith.constant 1 : i32
    %c1_i32_6 = arith.constant 1 : i32
    %c0_i32_7 = arith.constant 0 : i32
    %4 = tpu.memref_slice %arg0[%c1_i32_6, %c0_i32_7] : memref<2x1024xf32, #tpu.memory_space<any>> -> memref<1x1024xf32, #tpu.memory_space<any>>
    %c1_i32_8 = arith.constant 1 : i32
    %c0_i32_9 = arith.constant 0 : i32
    %5 = tpu.memref_slice %arg2[%c1_i32_8, %c0_i32_9] : memref<2x2048xf32, #tpu.memory_space<any>> -> memref<1x1024xf32, #tpu.memory_space<any>>
    %6 = tpu.memref_slice %arg3[%c0_i32_5, %c1_i32] : memref<2x2x!tpu.dma_semaphore, #tpu.memory_space<semaphore_mem>> -> memref<1x1x!tpu.dma_semaphore, #tpu.memory_space<semaphore_mem>>
    %7 = tpu.memref_squeeze %6 : memref<1x1x!tpu.dma_semaphore, #tpu.memory_space<semaphore_mem>> -> memref<!tpu.dma_semaphore, #tpu.memory_space<semaphore_mem>>
    tpu.enqueue_dma source(%4 : memref<1x1024xf32, #tpu.memory_space<any>>) target(%5 : memref<1x1024xf32, #tpu.memory_space<any>>) target_semaphore(%7 : memref<!tpu.dma_semaphore, #tpu.memory_space<semaphore_mem>>)
    %c1_i32_10 = arith.constant 1 : i32
    %c0_i32_11 = arith.constant 0 : i32
    %c0_i32_12 = arith.constant 0 : i32
    %c0_i32_13 = arith.constant 0 : i32
    %8 = tpu.memref_slice %arg1[%c0_i32_12, %c0_i32_13] : memref<2x1024xf32, #tpu.memory_space<any>> -> memref<1x1024xf32, #tpu.memory_space<any>>
    %c0_i32_14 = arith.constant 0 : i32
    %c1024_i32 = arith.constant 1024 : i32
    %9 = tpu.memref_slice %arg2[%c0_i32_14, %c1024_i32] : memref<2x2048xf32, #tpu.memory_space<any>> -> memref<1x1024xf32, #tpu.memory_space<any>>
    %10 = tpu.memref_slice %arg3[%c1_i32_10, %c0_i32_11] : memref<2x2x!tpu.dma_semaphore, #tpu.memory_space<semaphore_mem>> -> memref<1x1x!tpu.dma_semaphore, #tpu.memory_space<semaphore_mem>>
    %11 = tpu.memref_squeeze %10 : memref<1x1x!tpu.dma_semaphore, #tpu.memory_space<semaphore_mem>> -> memref<!tpu.dma_semaphore, #tpu.memory_space<semaphore_mem>>
    tpu.enqueue_dma source(%8 : memref<1x1024xf32, #tpu.memory_space<any>>) target(%9 : memref<1x1024xf32, #tpu.memory_space<any>>) target_semaphore(%11 : memref<!tpu.dma_semaphore, #tpu.memory_space<semaphore_mem>>)
    %c1_i32_15 = arith.constant 1 : i32
    %c1_i32_16 = arith.constant 1 : i32
    %c1_i32_17 = arith.constant 1 : i32
    %c0_i32_18 = arith.constant 0 : i32
    %12 = tpu.memref_slice %arg1[%c1_i32_17, %c0_i32_18] : memref<2x1024xf32, #tpu.memory_space<any>> -> memref<1x1024xf32, #tpu.memory_space<any>>
    %c1_i32_19 = arith.constant 1 : i32
    %c1024_i32_20 = arith.constant 1024 : i32
    %13 = tpu.memref_slice %arg2[%c1_i32_19, %c1024_i32_20] : memref<2x2048xf32, #tpu.memory_space<any>> -> memref<1x1024xf32, #tpu.memory_space<any>>
    %14 = tpu.memref_slice %arg3[%c1_i32_15, %c1_i32_16] : memref<2x2x!tpu.dma_semaphore, #tpu.memory_space<semaphore_mem>> -> memref<1x1x!tpu.dma_semaphore, #tpu.memory_space<semaphore_mem>>
    %15 = tpu.memref_squeeze %14 : memref<1x1x!tpu.dma_semaphore, #tpu.memory_space<semaphore_mem>> -> memref<!tpu.dma_semaphore, #tpu.memory_space<semaphore_mem>>
    tpu.enqueue_dma source(%12 : memref<1x1024xf32, #tpu.memory_space<any>>) target(%13 : memref<1x1024xf32, #tpu.memory_space<any>>) target_semaphore(%15 : memref<!tpu.dma_semaphore, #tpu.memory_space<semaphore_mem>>)
    %c0_i32_21 = arith.constant 0 : i32
    %c0_i32_22 = arith.constant 0 : i32
    %c0_i32_23 = arith.constant 0 : i32
    %c0_i32_24 = arith.constant 0 : i32
    %16 = tpu.memref_slice %arg0[%c0_i32_23, %c0_i32_24] : memref<2x1024xf32, #tpu.memory_space<any>> -> memref<1x1024xf32, #tpu.memory_space<any>>
    %c0_i32_25 = arith.constant 0 : i32
    %c0_i32_26 = arith.constant 0 : i32
    %17 = tpu.memref_slice %arg2[%c0_i32_25, %c0_i32_26] : memref<2x2048xf32, #tpu.memory_space<any>> -> memref<1x1024xf32, #tpu.memory_space<any>>
    %18 = tpu.memref_slice %arg3[%c0_i32_21, %c0_i32_22] : memref<2x2x!tpu.dma_semaphore, #tpu.memory_space<semaphore_mem>> -> memref<1x1x!tpu.dma_semaphore, #tpu.memory_space<semaphore_mem>>
    %19 = tpu.memref_squeeze %18 : memref<1x1x!tpu.dma_semaphore, #tpu.memory_space<semaphore_mem>> -> memref<!tpu.dma_semaphore, #tpu.memory_space<semaphore_mem>>
    tpu.wait_dma2 semaphore(%19 : memref<!tpu.dma_semaphore, #tpu.memory_space<semaphore_mem>>) src(%16 : memref<1x1024xf32, #tpu.memory_space<any>>) dst(%17 : memref<1x1024xf32, #tpu.memory_space<any>>)
    %c0_i32_27 = arith.constant 0 : i32
    %c1_i32_28 = arith.constant 1 : i32
    %c1_i32_29 = arith.constant 1 : i32
    %c0_i32_30 = arith.constant 0 : i32
    %20 = tpu.memref_slice %arg0[%c1_i32_29, %c0_i32_30] : memref<2x1024xf32, #tpu.memory_space<any>> -> memref<1x1024xf32, #tpu.memory_space<any>>
    %c1_i32_31 = arith.constant 1 : i32
    %c0_i32_32 = arith.constant 0 : i32
    %21 = tpu.memref_slice %arg2[%c1_i32_31, %c0_i32_32] : memref<2x2048xf32, #tpu.memory_space<any>> -> memref<1x1024xf32, #tpu.memory_space<any>>
    %22 = tpu.memref_slice %arg3[%c0_i32_27, %c1_i32_28] : memref<2x2x!tpu.dma_semaphore, #tpu.memory_space<semaphore_mem>> -> memref<1x1x!tpu.dma_semaphore, #tpu.memory_space<semaphore_mem>>
    %23 = tpu.memref_squeeze %22 : memref<1x1x!tpu.dma_semaphore, #tpu.memory_space<semaphore_mem>> -> memref<!tpu.dma_semaphore, #tpu.memory_space<semaphore_mem>>
    tpu.wait_dma2 semaphore(%23 : memref<!tpu.dma_semaphore, #tpu.memory_space<semaphore_mem>>) src(%20 : memref<1x1024xf32, #tpu.memory_space<any>>) dst(%21 : memref<1x1024xf32, #tpu.memory_space<any>>)
    %c1_i32_33 = arith.constant 1 : i32
    %c0_i32_34 = arith.constant 0 : i32
    %c0_i32_35 = arith.constant 0 : i32
    %c0_i32_36 = arith.constant 0 : i32
    %24 = tpu.memref_slice %arg1[%c0_i32_35, %c0_i32_36] : memref<2x1024xf32, #tpu.memory_space<any>> -> memref<1x1024xf32, #tpu.memory_space<any>>
    %c0_i32_37 = arith.constant 0 : i32
    %c1024_i32_38 = arith.constant 1024 : i32
    %25 = tpu.memref_slice %arg2[%c0_i32_37, %c1024_i32_38] : memref<2x2048xf32, #tpu.memory_space<any>> -> memref<1x1024xf32, #tpu.memory_space<any>>
    %26 = tpu.memref_slice %arg3[%c1_i32_33, %c0_i32_34] : memref<2x2x!tpu.dma_semaphore, #tpu.memory_space<semaphore_mem>> -> memref<1x1x!tpu.dma_semaphore, #tpu.memory_space<semaphore_mem>>
    %27 = tpu.memref_squeeze %26 : memref<1x1x!tpu.dma_semaphore, #tpu.memory_space<semaphore_mem>> -> memref<!tpu.dma_semaphore, #tpu.memory_space<semaphore_mem>>
    tpu.wait_dma2 semaphore(%27 : memref<!tpu.dma_semaphore, #tpu.memory_space<semaphore_mem>>) src(%24 : memref<1x1024xf32, #tpu.memory_space<any>>) dst(%25 : memref<1x1024xf32, #tpu.memory_space<any>>)
    %c1_i32_39 = arith.constant 1 : i32
    %c1_i32_40 = arith.constant 1 : i32
    %c1_i32_41 = arith.constant 1 : i32
    %c0_i32_42 = arith.constant 0 : i32
    %28 = tpu.memref_slice %arg1[%c1_i32_41, %c0_i32_42] : memref<2x1024xf32, #tpu.memory_space<any>> -> memref<1x1024xf32, #tpu.memory_space<any>>
    %c1_i32_43 = arith.constant 1 : i32
    %c1024_i32_44 = arith.constant 1024 : i32
    %29 = tpu.memref_slice %arg2[%c1_i32_43, %c1024_i32_44] : memref<2x2048xf32, #tpu.memory_space<any>> -> memref<1x1024xf32, #tpu.memory_space<any>>
    %30 = tpu.memref_slice %arg3[%c1_i32_39, %c1_i32_40] : memref<2x2x!tpu.dma_semaphore, #tpu.memory_space<semaphore_mem>> -> memref<1x1x!tpu.dma_semaphore, #tpu.memory_space<semaphore_mem>>
    %31 = tpu.memref_squeeze %30 : memref<1x1x!tpu.dma_semaphore, #tpu.memory_space<semaphore_mem>> -> memref<!tpu.dma_semaphore, #tpu.memory_space<semaphore_mem>>
    tpu.wait_dma2 semaphore(%31 : memref<!tpu.dma_semaphore, #tpu.memory_space<semaphore_mem>>) src(%28 : memref<1x1024xf32, #tpu.memory_space<any>>) dst(%29 : memref<1x1024xf32, #tpu.memory_space<any>>)
    return
  }
}

</mosaic_0001>

<llo_original>
// kernel: tpu_custom_call.1
$region0: #{tpu_custom_call.1}
  #allocation0 [shape = 'u32[]', space=smem, size = 0x4, offset = 0x4, fixed_abs, tag = 'smem constant byte address 0x4 - core index']
  #allocation1 [shape = 'u32[144,128]{1,0:T(1,128)}', space=vmem, size = 0x12000, scoped, tag = 'internal scratch']
  #allocation2 [shape = 's32[4]{0}', space=sflag, size = 0x10, scoped, tag = 'scratch operand']
  #allocation3 [shape = 's32[]', space=sflag, size = 0x4, offset = 0, fixed_abs, tag = 'sflag constant byte address 0x0 - dummy sync flag']
  #allocation5 [shape = 's32[]', space=sflag, size = 0x4, offset = 0, fixed_abs, tag = 'sflag constant byte address 0x0 - dummy sync flag']
  #allocation7 [shape = 's32[]', space=sflag, size = 0x4, offset = 0, fixed_abs, tag = 'sflag constant byte address 0x0 - dummy sync flag']
  #allocation9 [shape = 's32[]', space=sflag, size = 0x4, offset = 0, fixed_abs, tag = 'sflag constant byte address 0x0 - dummy sync flag']
  %s0 = inlined_call_operand.hbm [shape: f32[2,1024], index: 0, kind: input, shape index: {}]
  %s1 = inlined_call_operand.hbm [shape: f32[2,1024], index: 1, kind: input, shape index: {}]
  %s2 = inlined_call_operand.hbm [shape: f32[2,2048], index: 2, kind: output, shape index: {}]
  %s3 = sld [smem:[#allocation0]]
  $region2: #{tpu_custom_call.1} parent=0
    _
  %s5 = ssub.s32 1, %s3
  %s6 = scalar_select 0, %s5, %s3
  $region1: #{tpu_custom_call.1} parent=0
    #allocation4 [shape = 'u32[3]{0}', space=smem, size = 0xc, scoped, tag = 'DMA stride descriptor']
    #allocation6 [shape = 'u32[3]{0}', space=smem, size = 0xc, scoped, tag = 'DMA stride descriptor']
    #allocation8 [shape = 'u32[3]{0}', space=smem, size = 0xc, scoped, tag = 'DMA stride descriptor']
    #allocation10 [shape = 'u32[3]{0}', space=smem, size = 0xc, scoped, tag = 'DMA stride descriptor']
    %s8 = sshll.u32 1, 14
    %s9 = sxor.u32 4294967295, %s8
    %s12 = sshll.u32 3, 24
    %s13 = sxor.u32 4294967295, %s12
    %s14 = sand.u32 0, %s13
    %s16 = sor.u32 %s14, 0
    %19 = sst [smem:[#allocation4]] 32
    %s20 = scalar_lea.smem [#allocation4], 1
    %21 = sst [smem:[%s20]] 32
    %s22 = scalar_lea.smem [#allocation4], 2
    %23 = sst [smem:[%s22]] 1
    %25 = dma.general %s0, 128, %s2, [#allocation2], [#allocation3], [#allocation4], %s16, 0
    %s26 = scalar_lea.hbm %s0, 16
    %s27 = scalar_lea.hbm %s2, 16
    %s28 = scalar_lea.sflag [#allocation2], 1
    %s30 = sshll.u32 1, 14
    %s31 = sxor.u32 4294967295, %s30
    %s34 = sshll.u32 3, 24
    %s35 = sxor.u32 4294967295, %s34
    %s36 = sand.u32 0, %s35
    %s38 = sor.u32 %s36, 0
    %41 = sst [smem:[#allocation6]] 32
    %s42 = scalar_lea.smem [#allocation6], 1
    %43 = sst [smem:[%s42]] 32
    %s44 = scalar_lea.smem [#allocation6], 2
    %45 = sst [smem:[%s44]] 1
    %47 = dma.general %s26, 128, %s27, %s28, [#allocation5], [#allocation6], %s38, 0
    %s48 = scalar_lea.hbm %s2, 256
    %s49 = scalar_lea.sflag [#allocation2], 2
    %s51 = sshll.u32 1, 14
    %s52 = sxor.u32 4294967295, %s51
    %s55 = sshll.u32 3, 24
    %s56 = sxor.u32 4294967295, %s55
    %s57 = sand.u32 0, %s56
    %s59 = sor.u32 %s57, 0
    %62 = sst [smem:[#allocation8]] 32
    %s63 = scalar_lea.smem [#allocation8], 1
    %64 = sst [smem:[%s63]] 32
    %s65 = scalar_lea.smem [#allocation8], 2
    %66 = sst [smem:[%s65]] 1
    %68 = dma.general %s1, 128, %s48, %s49, [#allocation7], [#allocation8], %s59, 0
    %s69 = scalar_lea.hbm %s1, 16
    %s70 = scalar_lea.hbm %s2, 272
    %s71 = scalar_lea.sflag [#allocation2], 3
    %s73 = sshll.u32 1, 14
    %s74 = sxor.u32 4294967295, %s73
    %s77 = sshll.u32 3, 24
    %s78 = sxor.u32 4294967295, %s77
    %s79 = sand.u32 0, %s78
    %s81 = sor.u32 %s79, 0
    %84 = sst [smem:[#allocation10]] 32
    %s85 = scalar_lea.smem [#allocation10], 1
    %86 = sst [smem:[%s85]] 32
    %s87 = scalar_lea.smem [#allocation10], 2
    %88 = sst [smem:[%s87]] 1
    %90 = dma.general %s69, 128, %s70, %s71, [#allocation9], [#allocation10], %s81, 0
    %s91 = smul.u32 1, 8
    %s92 = sshll.u32 %s91, 4
    %93 = dma.done [#allocation2], %s92
    %s94 = sshll.u32 %s91, 4
    %95 = dma.done %s28, %s94
    %s96 = sshll.u32 %s91, 4
    %97 = dma.done %s49, %s96
    %s98 = sshll.u32 %s91, 4
    %99 = dma.done %s71, %s98
  %100 = vsyncmov [#allocation2]
  %s101 = vpop.sfrf %100
  %p102 = scmp.eq.s32.totalorder %s101, 0
  %p103 = pneg %p102
  %105 = shalt.err (%p103)
  %s106 = scalar_lea.sflag [#allocation2], 1
  %107 = vsyncmov %s106
  %s108 = vpop.sfrf %107
  %p109 = scmp.eq.s32.totalorder %s108, 0
  %p110 = pneg %p109
  %112 = shalt.err (%p110)
  %s113 = scalar_lea.sflag [#allocation2], 2
  %114 = vsyncmov %s113
  %s115 = vpop.sfrf %114
  %p116 = scmp.eq.s32.totalorder %s115, 0
  %p117 = pneg %p116
  %119 = shalt.err (%p117)
  %s120 = scalar_lea.sflag [#allocation2], 3
  %121 = vsyncmov %s120
  %s122 = vpop.sfrf %121
  %p123 = scmp.eq.s32.totalorder %s122, 0
  %p124 = pneg %p123
  %126 = shalt.err (%p124)

</llo_original>
